<compile_context>
chip_gen: v6e
topology: v6e:2x2x1
jax: 0.10.0
libtpu: 0.0.40
codegen_flags: <defaults>
</compile_context>

<pallas_src>
import functools
import math

import jax
import jax.numpy as jnp
from jax.experimental import pallas as pl
from jax.experimental.pallas import tpu as pltpu


# ----------------------------------------------------------------------------
# Faithful JAX port of the torch helpers (the module calls
# create_dx_dy_gradient with swapped (width, height) args; preserved here).
# ----------------------------------------------------------------------------
def create_dx_dy_gradient(height, width):
    dx_row = jnp.arange(1, width + 1, dtype=jnp.float32) / float(width)      # (width,)
    dy_col = jnp.arange(1, height + 1, dtype=jnp.float32) / float(height)    # (height,)
    dx = jnp.tile(dx_row[None, :], (height, 1))[None, None, :, :]            # (1,1,height,width)
    dy = jnp.tile(dy_col[:, None], (1, width))[None, None, :, :]             # (1,1,height,width)
    return jnp.concatenate((dx, dy), axis=1)                                  # (1,2,height,width)


def make_location_encode(width, height):
    # Mirrors the module:
    #   torch.cat((ones(1, width, height), create_dx_dy_gradient(width, height)[0]), 0)
    ones = jnp.ones((1, width, height), dtype=jnp.float32)
    grad = create_dx_dy_gradient(width, height)[0]                            # (2, width, height)
    return jnp.concatenate((ones, grad), axis=0)                              # (3, width, height)


# ----------------------------------------------------------------------------
# Kernel: pure streaming broadcast-add (bias row is resident per lane tile).
# ----------------------------------------------------------------------------
def _add_bias_kernel(bias_ref, x_ref, o_ref):
    # bias_ref: (1, TL) block (same row block every row step; follows lane tile)
    # x_ref/o_ref: (TB, TL) lane-dense block of flattened planes
    o_ref[...] = x_ref[...] + bias_ref[...]


# ----------------------------------------------------------------------------
# Tiling heuristics
# ----------------------------------------------------------------------------
def _vmem_limit_bytes():
    """Scoped-VMEM limit with ~25% headroom under physical capacity."""
    try:
        cap = pltpu.get_tpu_info().vmem_capacity_bytes
    except Exception:
        cap = 64 << 20  # conservative fallback (v7x-sized)
    return int(min(cap * 3 // 4, 96 << 20))   # ~48 MiB on v7x, ~96 MiB on v5e/v6e


def _plane_group(rows, lanes):
    """Smallest g with (g*lanes) % 128 == 0 that also divides rows (else 1)."""
    g = 128 // math.gcd(lanes, 128)
    if g > 1 and rows % g == 0:
        return g
    return 1


def _choose_tiles(rows, lanes, itemsize, vmem_limit):
    """Pick (row_block, lane_block) under the VMEM budget.

    Working set per grid step ~= 2 arrays (x + out) * 2 pipeline buffers *
    (tb * tl * itemsize) + bias; it must stay well under `vmem_limit`.
    """
    pack = max(8, 32 // itemsize)                     # 8 f32, 16 bf16, 32 int8
    budget = vmem_limit // 2                          # headroom for bias + scratch
    # Bigger blocks amortize the ~0.35us/step overhead; roofline flat > ~4 MiB.
    block_target = min(max(1 << 20, vmem_limit // 8), 8 << 20)

    # Lane tile: only split lanes when even a minimal pack-row block would blow
    # the budget, and only when the lane dim is a clean multiple of 128.
    tl = lanes
    if lanes % 128 == 0:
        max_tl = budget // (4 * pack * itemsize)
        if max_tl < lanes:
            tl = max(128, (max_tl // 128) * 128)

    # Row tile.
    if rows <= pack:
        tb = rows                                     # full extent (always legal)
    else:
        target_rows = max(pack, block_target // max(tl * itemsize, 1))
        tb = min(rows, max(pack, (target_rows // pack) * pack))
        while tb > pack and 4 * tb * tl * itemsize > budget:
            tb = max(pack, ((tb // 2) // pack) * pack)
        # Megacore (v7x): keep >= 2 grid steps so both TensorCores get work.
        lane_steps = -(-lanes // tl)
        if tb >= rows and lane_steps == 1 and rows >= 2 * pack:
            tb = max(pack, ((rows // 2) // pack) * pack)
    return tb, tl


# ----------------------------------------------------------------------------
# Forward wrapper
# ----------------------------------------------------------------------------
@functools.partial(jax.jit, donate_argnums=(0,))
def added_gradient_forward(inputs, location_encode, location_bias):
    """inputs: (N, C, width, height); returns same shape/dtype."""
    n, c, w, h = inputs.shape
    rows, lanes = n * c, w * h
    itemsize = inputs.dtype.itemsize

    # Grid-invariant bias: computed once in f32 (exact for f32 inputs).
    bias2d = jnp.sum(location_encode.astype(jnp.float32)
                     * location_bias.astype(jnp.float32), axis=0)              # (w, h)
    bias_row = bias2d.reshape(1, lanes).astype(inputs.dtype)                   # (1, w*h)

    # Lane-dense layout: group g planes per row so the last dim % 128 == 0.
    g = _plane_group(rows, lanes)
    rows2, lanes2 = rows // g, lanes * g
    x_flat = inputs.reshape(rows2, lanes2)
    bias_flat = jnp.tile(bias_row, (1, g)) if g > 1 else bias_row              # (1, lanes2)

    vmem_limit = _vmem_limit_bytes()
    tb, tl = _choose_tiles(rows2, lanes2, itemsize, vmem_limit)
    grid = (-(-rows2 // tb), -(-lanes2 // tl))

    out_flat = pl.pallas_call(
        _add_bias_kernel,
        out_shape=jax.ShapeDtypeStruct((rows2, lanes2), inputs.dtype),
        grid_spec=pltpu.PrefetchScalarGridSpec(
            num_scalar_prefetch=0,
            grid=grid,
            in_specs=[
                pl.BlockSpec((1, tl), lambda i, j: (0, j)),    # bias (follows lane tile)
                pl.BlockSpec((tb, tl), lambda i, j: (i, j)),   # streamed plane block
            ],
            out_specs=pl.BlockSpec((tb, tl), lambda i, j: (i, j)),
        ),
        compiler_params=pltpu.CompilerParams(
            dimension_semantics=("parallel", "parallel"),
            vmem_limit_bytes=vmem_limit,
        ),
        input_output_aliases={1: 0},   # in-place: x_flat buffer -> output
    )(bias_flat, x_flat)

    return out_flat.reshape(n, c, w, h)


def reference_forward(inputs, location_encode, location_bias):
    # Pure-JAX reference matching the PyTorch forward (learnable=True, gradient=True).
    scaled = location_encode * location_bias                                   # (3, w, h)
    return inputs + jnp.sum(scaled, axis=0)                                    # broadcast over N, C


# TODO(synk): set_size() (cubic skimage.resize rescaling of locationBias) is a
# host-side utility outside the forward pass and is not ported.

if __name__ == "__main__":
    key = jax.random.PRNGKey(0)

    # ---- primary check: the demo size from the module ----------------------
    N, C, WIDTH, HEIGHT = 2, 4, 16, 16
    kx, kb, kx2, kb2 = jax.random.split(key, 4)

    x = jax.random.normal(kx, (N, C, WIDTH, HEIGHT), dtype=jnp.float32)
    location_encode = make_location_encode(WIDTH, HEIGHT)                      # (3, 16, 16)
    # __init__ uses zeros; use non-trivial values so the compute path is real.
    location_bias = 0.1 * jax.random.normal(kb, (3, WIDTH, HEIGHT), dtype=jnp.float32)

    # Compute the reference BEFORE the kernel call (the kernel donates x).
    ref = jax.block_until_ready(reference_forward(x, location_encode, location_bias))

    out = jax.block_until_ready(added_gradient_forward(x, location_encode, location_bias))
    assert out.shape == ref.shape and out.dtype == ref.dtype
    assert jnp.allclose(out, ref, atol=1e-6, rtol=1e-6), "mismatch vs reference (16x16)"

    # ---- secondary check: width != height (validates the arg-swap port) ----
    W2, H2 = 8, 16
    x2 = jax.random.normal(kx2, (2, 3, W2, H2), dtype=jnp.float32)
    enc2 = make_location_encode(W2, H2)                                        # (3, 8, 16)
    bias2 = 0.1 * jax.random.normal(kb2, (3, W2, H2), dtype=jnp.float32)

    ref2 = jax.block_until_ready(reference_forward(x2, enc2, bias2))
    out2 = jax.block_until_ready(added_gradient_forward(x2, enc2, bias2))
    assert jnp.allclose(out2, ref2, atol=1e-6, rtol=1e-6), "mismatch vs reference (8x16)"

    print("KERNEL_OK")
</pallas_src>

<mosaic_0001>
module attributes {stable_mosaic.version = 11 : i64} {
  func.func @_add_bias_kernel(%arg0: i32, %arg1: i32, %arg2: memref<1x256xf32, #tpu.memory_space<vmem>>, %arg3: memref<8x256xf32, #tpu.memory_space<vmem>>, %arg4: memref<8x256xf32, #tpu.memory_space<vmem>>) attributes {dimension_semantics = [#tpu.dimension_semantics<parallel>, #tpu.dimension_semantics<parallel>], iteration_bounds = array<i64: 1, 1>, scalar_prefetch = 0 : i64, scratch_operands = 0 : i64, tpu.core_type = #tpu.core_type<tc>, window_params = [{transform_indices = @transform_0, window_bounds = array<i64: 1, 256>}, {transform_indices = @transform_1, window_bounds = array<i64: 8, 256>}, {transform_indices = @transform_2, window_bounds = array<i64: 8, 256>}]} {
    %c0 = arith.constant 0 : index
    %c0_0 = arith.constant 0 : index
    %0 = vector.load %arg3[%c0, %c0_0] : memref<8x256xf32, #tpu.memory_space<vmem>>, vector<8x256xf32>
    %c0_1 = arith.constant 0 : index
    %c0_2 = arith.constant 0 : index
    %1 = vector.load %arg2[%c0_1, %c0_2] : memref<1x256xf32, #tpu.memory_space<vmem>>, vector<1x256xf32>
    %2 = vector.broadcast %1 : vector<1x256xf32> to vector<8x256xf32>
    %3 = arith.addf %0, %2 : vector<8x256xf32>
    %c0_3 = arith.constant 0 : index
    %c0_4 = arith.constant 0 : index
    %4 = vector.load %arg4[%c0_3, %c0_4] : memref<8x256xf32, #tpu.memory_space<vmem>>, vector<8x256xf32>
    tpu.vector_store %arg4[%c0_3, %c0_4], %3 {strides = array<i32>} : memref<8x256xf32, #tpu.memory_space<vmem>>, vector<8x256xf32>,
    return
  }
  func.func @transform_0(%arg0: i32, %arg1: i32) -> (i32, i32) {
    %c0_i32 = arith.constant 0 : i32
    %c0_i32_0 = arith.constant 0 : i32
    return %c0_i32, %arg1 : i32, i32
  }
  func.func @transform_1(%arg0: i32, %arg1: i32) -> (i32, i32) {
    %c0_i32 = arith.constant 0 : i32
    return %arg0, %arg1 : i32, i32
  }
  func.func @transform_2(%arg0: i32, %arg1: i32) -> (i32, i32) {
    %c0_i32 = arith.constant 0 : i32
    return %arg0, %arg1 : i32, i32
  }
}

</mosaic_0001>

<llo_original>
// kernel: added_gradient_forward.1
$region0: #{added_gradient_forward.1}
  #allocation0 [shape = 'u32[]', space=smem, size = 0x4, offset = 0x4, fixed_abs, tag = 'smem constant byte address 0x4 - core index']
  #allocation1 [shape = 'u32[144,128]{1,0:T(1,128)}', space=vmem, size = 0x12000, scoped, tag = 'internal scratch']
  %s0 = inlined_call_operand.vmem [shape: f32[1,256], index: 0, kind: input, shape index: {}]
  %s1 = inlined_call_operand.vmem [shape: f32[8,256], index: 1, kind: input, shape index: {}, may-alias: {1,2}]
  %s2 = inlined_call_operand.vmem [shape: f32[8,256], index: 2, kind: output, shape index: {}, may-alias: {1,2}]
  %s3 = sld [smem:[#allocation0]]
  $region18: #{added_gradient_forward.1} parent=0
    _
  %s5 = ssub.s32 1, %s3
  %s6 = scalar_select 0, %s5, %s3
  // Predicated region
  $region2: #{added_gradient_forward.1} parent=0 // pred_check
    _
  $region3: #{added_gradient_forward.1} parent=0 // pred_check_branch
    %8 = sbr.rel (0) target = $region5
  $region4: #{added_gradient_forward.1} parent=0 // pred_region
    _
  $region5: #{added_gradient_forward.1} parent=0 // pred_fallthru
    _
  // Predicated region
  $region6: #{added_gradient_forward.1} parent=0 // pred_check
    _
  $region7: #{added_gradient_forward.1} parent=0 // pred_check_branch
    %10 = sbr.rel (0) target = $region9
  $region8: #{added_gradient_forward.1} parent=0 // pred_region
    _
  $region9: #{added_gradient_forward.1} parent=0 // pred_fallthru
    _
  %v11 = vld [vmem:[%s1] sm:$0xff]
  %v12 = vld [vmem:[%s1 + $0x8] sm:$0xff]
  %v13 = vld [vmem:[%s0] sm:$0x3]
  %v15 = vlaneseq
  %v16 = vshrl.u32 %v15, 7
  %v17 = vsub.s32 0, %v16
  %v18 = vrot.slane %v13, %v17
  %v19 = vlaneseq
  %v20 = vshrl.u32 %v19, 7
  %v21 = vsub.s32 1, %v20
  %v22 = vrot.slane %v13, %v21
  %v25 = vadd.f32 %v11, %v18
  %v26 = vadd.f32 %v12, %v22
  %27 = vst [vmem:[%s2] sm:$0xff] %v25
  %28 = vst [vmem:[%s2 + $0x8] sm:$0xff] %v26
  // Predicated region
  $region10: #{added_gradient_forward.1} parent=0 // pred_check
    _
  $region11: #{added_gradient_forward.1} parent=0 // pred_check_branch
    %30 = sbr.rel (0) target = $region13
  $region12: #{added_gradient_forward.1} parent=0 // pred_region
    _
  $region13: #{added_gradient_forward.1} parent=0 // pred_fallthru
    _
  // Predicated region
  $region14: #{added_gradient_forward.1} parent=0 // pred_check
    _
  $region15: #{added_gradient_forward.1} parent=0 // pred_check_branch
    %32 = sbr.rel (0) target = $region17
  $region16: #{added_gradient_forward.1} parent=0 // pred_region
    _
  $region17: #{added_gradient_forward.1} parent=0 // pred_fallthru
    _

</llo_original>
